<compile_context>
chip_gen: v5e
topology: v5e:2x2
jax: 0.10.0
libtpu: 0.0.40
codegen_flags: <defaults>
</compile_context>

<pallas_src>
import functools
import math

import jax
import jax.numpy as jnp
import numpy as np
from jax.experimental import pallas as pl
from jax.experimental.pallas import tpu as pltpu

EPS = 1e-8
_LOG_EPS = math.log(EPS)


def _kernel(logits_ref, kld_ref, lossvec_ref, idx_ref):
    # logits_ref, kld_ref: (P, TB)   (proposals on sublanes, batch on lanes)
    # lossvec_ref: (1, TB) f32       per-row KL divergence
    # idx_ref:     (1, TB) int32     per-row argmax over proposals (first hit)
    logits = logits_ref[...].astype(jnp.float32)               # (P, TB)
    kld = kld_ref[...].astype(jnp.float32)                     # (P, TB)
    num_props = logits.shape[0]

    # --- log-softmax over proposals; one max reduction, reused for argmax ---
    m = jnp.max(logits, axis=0, keepdims=True)                 # (1, TB)
    shifted = logits - m
    sum_e = jnp.sum(jnp.exp(shifted), axis=0, keepdims=True)   # (1, TB)
    log_sm = shifted - jnp.log(sum_e)                          # (P, TB), <= 0

    # --- KL divergence per row (matches clamp(softmax, eps, 1) exactly) ---
    y_true = jnp.clip(kld, EPS, 1.0)
    log_y_pred = jnp.maximum(log_sm, jnp.float32(_LOG_EPS))
    lossvec_ref[...] = jnp.sum(y_true * (jnp.log(y_true) - log_y_pred),
                               axis=0, keepdims=True)          # (1, TB)

    # --- first-max argmax over proposals (reuses m) ---
    prop_f = jax.lax.broadcasted_iota(jnp.int32, logits.shape, 0).astype(jnp.float32)
    idx_f = jnp.min(jnp.where(logits == m, prop_f, jnp.float32(num_props)),
                    axis=0, keepdims=True)                     # (1, TB)
    idx_ref[...] = idx_f.astype(jnp.int32)


def _round_up(x, m):
    return ((x + m - 1) // m) * m


def _choose_block_b(B, P, block_b):
    """Lane-axis batch tile TB and padded batch size B_pad."""
    b8 = _round_up(B, 8)
    if block_b is not None:
        cap = max(128, _round_up(int(block_b), 128))
    else:
        # ~4 MiB per (P, TB) f32 input slab: plenty of headroom in the 128 MiB
        # VMEM of v5e/v6e; the 48 MiB vmem_limit below keeps v7x (64 MiB) safe.
        budget_elems = 1 << 20
        cap = max(128, min(4096, (budget_elems // max(P, 1)) // 128 * 128))
    if b8 < 256:
        return b8, b8                  # tiny batch: single full-width tile
    # At least two lane-dense (multiple-of-128) tiles so the "parallel" grid
    # axis can be split across v7x's two TensorCores.
    tb = min(cap, _round_up(-(-b8 // 2), 128))
    return tb, _round_up(B, tb)


@functools.partial(jax.jit, static_argnames=("reg_lambda", "block_b"))
def cross_entropy_criterion(att_scores, kld_labels, gt_reg, reg_lambda=1.0,
                            block_b=None):
    """is_multi=False forward of CrossEntropyCriterion.

    att_scores: (B, P, 5); kld_labels: (B, P); gt_reg: (B, 4) or (B, 1, 4).
    Returns (loss, loss_vec) with loss_vec of shape (B,).
    """
    B, P, C = att_scores.shape
    assert C == 5, "att_scores must be (B, num_props, 5)"

    def _prep(x):   # keep bf16 (halves HBM->VMEM bytes); everything else -> f32
        return x if x.dtype == jnp.bfloat16 else x.astype(jnp.float32)

    # Only the cls-logit channel and the kld labels go through the kernel.
    # Transposing just these (B, P) planes to (P, B) is 5x less data than the
    # old full (B, P, 5) transpose; the reg channels stay untouched in HBM.
    logits_t = jnp.transpose(_prep(att_scores[:, :, 0]), (1, 0))   # (P, B)
    kld_t = jnp.transpose(_prep(kld_labels), (1, 0))               # (P, B)

    TB, B_pad = _choose_block_b(B, P, block_b)
    if B_pad != B:
        pad = B_pad - B
        logits_t = jnp.pad(logits_t, ((0, 0), (0, pad)))
        kld_t = jnp.pad(kld_t, ((0, 0), (0, pad)))
    grid = (B_pad // TB,)

    block_bytes = (2 * P + 2) * TB * 4
    # Cap well below v7x's 64 MiB physical VMEM; raise above the 32 MiB default
    # only when the blocks actually need it (large P * TB).
    vmem_limit = int(min(48 * 2**20, max(32 * 2**20, 4 * block_bytes)))

    cost = pl.CostEstimate(
        flops=int(10 * B_pad * P),
        transcendentals=int(2 * B_pad * P),
        bytes_accessed=int((2 * P + 2) * B_pad * 4),
    )

    loss_vec_pad, idx_pad = pl.pallas_call(
        _kernel,
        grid=grid,
        in_specs=[
            pl.BlockSpec((P, TB), lambda i: (0, i)),
            pl.BlockSpec((P, TB), lambda i: (0, i)),
        ],
        out_specs=(
            pl.BlockSpec((1, TB), lambda i: (0, i)),
            pl.BlockSpec((1, TB), lambda i: (0, i)),
        ),
        out_shape=(
            jax.ShapeDtypeStruct((1, B_pad), jnp.float32),
            jax.ShapeDtypeStruct((1, B_pad), jnp.int32),
        ),
        compiler_params=pltpu.CompilerParams(
            dimension_semantics=("parallel",),   # v7x: shard batch tiles over 2 TCs
            vmem_limit_bytes=vmem_limit,
        ),
        cost_estimate=cost,
    )(logits_t, kld_t)

    loss_vec = loss_vec_pad[0, :B]
    pred_label = idx_pad[0, :B]

    # Tiny B x 4 gather + SmoothL1(beta=1, mean) in the wrapper — the kernel
    # never streams the 4 reg channels (only B*4 values are ever needed).
    gt = gt_reg.astype(jnp.float32).reshape(B, 4)
    pred_reg = att_scores[jnp.arange(B), pred_label, 1:].astype(jnp.float32)  # (B, 4)
    d = pred_reg - gt
    ad = jnp.abs(d)
    loss_reg = jnp.mean(jnp.where(ad < 1.0, 0.5 * d * d, ad - 0.5))

    loss_cls = jnp.mean(loss_vec)
    loss = loss_cls + jnp.float32(reg_lambda) * loss_reg
    return loss, loss_vec


def _reference(att_scores, kld_labels, gt_reg, reg_lambda=1.0):
    """Pure-JAX replica of the PyTorch forward (is_multi=False)."""
    att_scores = att_scores.astype(jnp.float32)
    kld_labels = kld_labels.astype(jnp.float32)
    B = att_scores.shape[0]
    gt = gt_reg.astype(jnp.float32).reshape(B, 4)
    att_logits = att_scores[:, :, 0]
    sm = jax.nn.softmax(att_logits, axis=1)
    y_true = jnp.clip(kld_labels, EPS, 1.0)
    y_pred = jnp.clip(sm, EPS, 1.0)
    loss_vec = jnp.sum(y_true * jnp.log(y_true / y_pred), axis=-1)
    loss_cls = jnp.mean(loss_vec)
    pred_label = jnp.argmax(att_logits, axis=1)
    pred_reg = att_scores[jnp.arange(B), pred_label, 1:]
    diff = pred_reg - gt
    ad = jnp.abs(diff)
    sl1 = jnp.where(ad < 1.0, 0.5 * diff * diff, ad - 0.5)
    return loss_cls + reg_lambda * jnp.mean(sl1), loss_vec


if __name__ == "__main__":
    key = jax.random.PRNGKey(0)
    k1, k2, k3, k4, k5, k6 = jax.random.split(key, 6)

    # --- case 1: tiny shapes, single tile ---
    B, P = 2, 8
    att = jax.random.normal(k1, (B, P, 5), dtype=jnp.float32)
    kld = jax.nn.softmax(jax.random.normal(k2, (B, P), dtype=jnp.float32), axis=1)
    gt = jax.random.normal(k3, (B, 1, 4), dtype=jnp.float32)

    loss, loss_vec = cross_entropy_criterion(att, kld, gt, reg_lambda=1.0)
    jax.block_until_ready((loss, loss_vec))
    ref_loss, ref_loss_vec = _reference(att, kld, gt, 1.0)
    np.testing.assert_allclose(np.asarray(loss), np.asarray(ref_loss),
                               rtol=1e-5, atol=1e-5)
    np.testing.assert_allclose(np.asarray(loss_vec), np.asarray(ref_loss_vec),
                               rtol=1e-5, atol=1e-5)

    # --- case 1b: duplicate maxima -> first-hit argmax semantics preserved ---
    att_dup = att.at[0, 2, 0].set(10.0).at[0, 5, 0].set(10.0)
    loss_d, loss_vec_d = cross_entropy_criterion(att_dup, kld, gt, reg_lambda=1.0)
    jax.block_until_ready((loss_d, loss_vec_d))
    ref_loss_d, ref_loss_vec_d = _reference(att_dup, kld, gt, 1.0)
    np.testing.assert_allclose(np.asarray(loss_d), np.asarray(ref_loss_d),
                               rtol=1e-5, atol=1e-5)
    np.testing.assert_allclose(np.asarray(loss_vec_d), np.asarray(ref_loss_vec_d),
                               rtol=1e-5, atol=1e-5)

    # --- case 2: multi-tile grid over batch (padding + "parallel" axis) ---
    B2, P2 = 300, 16
    att2 = jax.random.normal(k4, (B2, P2, 5), dtype=jnp.float32)
    kld2 = jax.nn.softmax(jax.random.normal(k5, (B2, P2), dtype=jnp.float32), axis=1)
    gt2 = jax.random.normal(k6, (B2, 4), dtype=jnp.float32)

    loss2, loss_vec2 = cross_entropy_criterion(att2, kld2, gt2,
                                               reg_lambda=0.5, block_b=128)
    jax.block_until_ready((loss2, loss_vec2))
    ref_loss2, ref_loss_vec2 = _reference(att2, kld2, gt2, 0.5)
    np.testing.assert_allclose(np.asarray(loss2), np.asarray(ref_loss2),
                               rtol=1e-5, atol=1e-5)
    np.testing.assert_allclose(np.asarray(loss_vec2), np.asarray(ref_loss_vec2),
                               rtol=1e-5, atol=1e-5)

    # TODO(synk): the is_multi=True branch (reg_inweight-weighted SmoothL1 over all
    # proposals) is not implemented; this kernel covers the default is_multi=False path.
    print("KERNEL_OK")
</pallas_src>

<mosaic_0001>
module attributes {stable_mosaic.version = 11 : i64} {
  func.func @_kernel(%arg0: i32, %arg1: memref<8x8xf32, #tpu.memory_space<vmem>>, %arg2: memref<8x8xf32, #tpu.memory_space<vmem>>, %arg3: memref<1x8xf32, #tpu.memory_space<vmem>>, %arg4: memref<1x8xi32, #tpu.memory_space<vmem>>) attributes {dimension_semantics = [#tpu.dimension_semantics<parallel>], iteration_bounds = array<i64: 1>, scalar_prefetch = 0 : i64, scratch_operands = 0 : i64, tpu.core_type = #tpu.core_type<tc>, window_params = [{transform_indices = @transform_0, window_bounds = array<i64: 8, 8>}, {transform_indices = @transform_1, window_bounds = array<i64: 8, 8>}, {transform_indices = @transform_2, window_bounds = array<i64: 1, 8>}, {transform_indices = @transform_3, window_bounds = array<i64: 1, 8>}]} {
    %c0 = arith.constant 0 : index
    %c0_0 = arith.constant 0 : index
    %0 = vector.load %arg1[%c0, %c0_0] : memref<8x8xf32, #tpu.memory_space<vmem>>, vector<8x8xf32>
    %c0_1 = arith.constant 0 : index
    %c0_2 = arith.constant 0 : index
    %1 = vector.load %arg2[%c0_1, %c0_2] : memref<8x8xf32, #tpu.memory_space<vmem>>, vector<8x8xf32>
    %cst = arith.constant dense<0xFF800000> : vector<8xf32>
    %2 = vector.multi_reduction <maximumf>, %0, %cst [0] : vector<8x8xf32> to vector<8xf32>
    %3 = vector.shape_cast %2 : vector<8xf32> to vector<1x8xf32>
    %4 = vector.broadcast %3 : vector<1x8xf32> to vector<8x8xf32>
    %5 = arith.subf %0, %4 : vector<8x8xf32>
    %6 = math.exp %5 : vector<8x8xf32>
    %cst_3 = arith.constant dense<0.000000e+00> : vector<8xf32>
    %7 = vector.multi_reduction <add>, %6, %cst_3 [0] : vector<8x8xf32> to vector<8xf32>
    %8 = vector.shape_cast %7 : vector<8xf32> to vector<1x8xf32>
    %9 = math.log %8 : vector<1x8xf32>
    %10 = vector.broadcast %9 : vector<1x8xf32> to vector<8x8xf32>
    %11 = arith.subf %5, %10 : vector<8x8xf32>
    %cst_4 = arith.constant 9.99999993E-9 : f32
    %cst_5 = arith.constant 1.000000e+00 : f32
    %12 = vector.broadcast %cst_4 : f32 to vector<8x8xf32>
    %13 = arith.maximumf %12, %1 : vector<8x8xf32>
    %14 = vector.broadcast %cst_5 : f32 to vector<8x8xf32>
    %15 = arith.minimumf %14, %13 : vector<8x8xf32>
    %cst_6 = arith.constant -18.420681 : f32
    %16 = vector.broadcast %cst_6 : f32 to vector<8x8xf32>
    %17 = arith.maximumf %11, %16 : vector<8x8xf32>
    %18 = math.log %15 : vector<8x8xf32>
    %19 = arith.subf %18, %17 : vector<8x8xf32>
    %20 = arith.mulf %15, %19 : vector<8x8xf32>
    %cst_7 = arith.constant dense<0.000000e+00> : vector<8xf32>
    %21 = vector.multi_reduction <add>, %20, %cst_7 [0] : vector<8x8xf32> to vector<8xf32>
    %22 = vector.shape_cast %21 : vector<8xf32> to vector<1x8xf32>
    %c0_8 = arith.constant 0 : index
    %c0_9 = arith.constant 0 : index
    %23 = vector.load %arg3[%c0_8, %c0_9] : memref<1x8xf32, #tpu.memory_space<vmem>>, vector<1x8xf32>
    tpu.vector_store %arg3[%c0_8, %c0_9], %22 {strides = array<i32>} : memref<1x8xf32, #tpu.memory_space<vmem>>, vector<1x8xf32>,
    %24 = tpu.iota {dimensions = array<i32: 0>} : vector<8x8xi32>
    %25 = arith.sitofp %24 : vector<8x8xi32> to vector<8x8xf32>
    %26 = vector.broadcast %3 : vector<1x8xf32> to vector<8x8xf32>
    %27 = arith.cmpf oeq, %0, %26 : vector<8x8xf32>
    %cst_10 = arith.constant 8.000000e+00 : f32
    %28 = vector.broadcast %cst_10 : f32 to vector<8x8xf32>
    %29 = arith.select %27, %25, %28 : vector<8x8xi1>, vector<8x8xf32>
    %cst_11 = arith.constant dense<0x7F800000> : vector<8xf32>
    %30 = vector.multi_reduction <minimumf>, %29, %cst_11 [0] : vector<8x8xf32> to vector<8xf32>
    %31 = vector.shape_cast %30 : vector<8xf32> to vector<1x8xf32>
    %32 = arith.fptosi %31 : vector<1x8xf32> to vector<1x8xi32>
    %c0_12 = arith.constant 0 : index
    %c0_13 = arith.constant 0 : index
    %33 = vector.load %arg4[%c0_12, %c0_13] : memref<1x8xi32, #tpu.memory_space<vmem>>, vector<1x8xi32>
    tpu.vector_store %arg4[%c0_12, %c0_13], %32 {strides = array<i32>} : memref<1x8xi32, #tpu.memory_space<vmem>>, vector<1x8xi32>,
    return
  }
  func.func @transform_0(%arg0: i32) -> (i32, i32) {
    %c0_i32 = arith.constant 0 : i32
    %c0_i32_0 = arith.constant 0 : i32
    return %c0_i32, %arg0 : i32, i32
  }
  func.func @transform_1(%arg0: i32) -> (i32, i32) {
    %c0_i32 = arith.constant 0 : i32
    %c0_i32_0 = arith.constant 0 : i32
    return %c0_i32, %arg0 : i32, i32
  }
  func.func @transform_2(%arg0: i32) -> (i32, i32) {
    %c0_i32 = arith.constant 0 : i32
    %c0_i32_0 = arith.constant 0 : i32
    return %c0_i32, %arg0 : i32, i32
  }
  func.func @transform_3(%arg0: i32) -> (i32, i32) {
    %c0_i32 = arith.constant 0 : i32
    %c0_i32_0 = arith.constant 0 : i32
    return %c0_i32, %arg0 : i32, i32
  }
}

</mosaic_0001>

<llo_original>
// kernel: cross_entropy_criterion.1
$region0: #{cross_entropy_criterion.1}
  #allocation0 [shape = 'u32[]', space=smem, size = 0x4, offset = 0x4, fixed_abs, tag = 'smem constant byte address 0x4 - core index']
  #allocation1 [shape = 'u32[72,128]{1,0:T(1,128)}', space=vmem, size = 0x9000, scoped, tag = 'internal scratch']
  %s0 = inlined_call_operand.vmem [shape: f32[8,8], index: 0, kind: input, shape index: {}]
  %s1 = inlined_call_operand.vmem [shape: f32[8,8], index: 1, kind: input, shape index: {}]
  %s2 = inlined_call_operand.vmem [shape: f32[1,8], index: 2, kind: output, shape index: {0}]
  %s3 = inlined_call_operand.vmem [shape: s32[1,8], index: 3, kind: output, shape index: {1}]
  %4 = xla_tuple %s2, %s3
  %s5 = sld [smem:[#allocation0]]
  $region26: #{cross_entropy_criterion.1} parent=0
    _
  %s7 = ssub.s32 1, %s5
  %s8 = scalar_select 0, %s7, %s5
  // Predicated region
  $region2: #{cross_entropy_criterion.1} parent=0 // pred_check
    _
  $region3: #{cross_entropy_criterion.1} parent=0 // pred_check_branch
    %10 = sbr.rel (0) target = $region5
  $region4: #{cross_entropy_criterion.1} parent=0 // pred_region
    _
  $region5: #{cross_entropy_criterion.1} parent=0 // pred_fallthru
    _
  // Predicated region
  $region6: #{cross_entropy_criterion.1} parent=0 // pred_check
    _
  $region7: #{cross_entropy_criterion.1} parent=0 // pred_check_branch
    %12 = sbr.rel (0) target = $region9
  $region8: #{cross_entropy_criterion.1} parent=0 // pred_region
    _
  $region9: #{cross_entropy_criterion.1} parent=0 // pred_fallthru
    _
  %v13 = vld [vmem:[%s0] sm:$0xff]
  %v14 = vld [vmem:[%s1] sm:$0xff]
  %vm15 = vcmask 64512
  %v16 = vsel %vm15, %v13, -inf
  %v17 = vrot.slane %v16, 4
  %v18 = vmax.f32 %v16, %v17
  %v19 = vrot.slane %v18, 2
  %v20 = vmax.f32 %v18, %v19
  %v21 = vrot.slane %v20, 1
  %v22 = vmax.f32 %v20, %v21
  %v23 = vsub.f32 %v13, %v22
  %v24 = vmul.f32 %v23, 1.442695
  %v25 = vpow.pop %v24
  %v26 = vsel %vm15, %v25, 0.0
  %v27 = vrot.slane %v26, 4
  %v28 = vadd.f32 %v26, %v27
  %v29 = vrot.slane %v28, 2
  %v30 = vadd.f32 %v28, %v29
  %v31 = vrot.slane %v30, 1
  %v32 = vadd.f32 %v30, %v31
  %v33 = vlog2.pop %v32
  %v34 = vmul.f32 %v33, 0.6931472
  %v35 = vsub.f32 %v23, %v34
  %v36 = vmax.f32 %v14, 1e-08
  %v37 = vmin.f32 %v36, 1.0
  %v38 = vmax.f32 %v35, -18.420681
  %v39 = vlog2.pop %v37
  %v40 = vmul.f32 %v39, 0.6931472
  %v41 = vsub.f32 %v40, %v38
  %v42 = vmul.f32 %v37, %v41
  %v43 = vsel %vm15, %v42, 0.0
  %v44 = vrot.slane %v43, 4
  %v45 = vadd.f32 %v43, %v44
  %v46 = vrot.slane %v45, 2
  %v47 = vadd.f32 %v45, %v46
  %v48 = vrot.slane %v47, 1
  %v49 = vadd.f32 %v47, %v48
  %vm50 = vcmask 57344
  %51 = vst.msk [vmem:[%s2] sm:$0x1] %vm50, %v49
  %v52 = vlaneseq
  %v53 = vshrl.u32 %v52, 7
  %v54 = vcvt.s32.f32 %v53
  %vm55 = vcmp.eq.f32.partialorder %v13, %v22
  %v56 = vsel %vm55, %v54, 8.0
  %v57 = vsel %vm15, %v56, inf
  %v58 = vrot.slane %v57, 4
  %v59 = vmin.f32 %v57, %v58
  %v60 = vrot.slane %v59, 2
  %v61 = vmin.f32 %v59, %v60
  %v62 = vrot.slane %v61, 1
  %v63 = vmin.f32 %v61, %v62
  %v64 = vcvt.f32.s32.to.zero.pseudo %v63
  %65 = vst.msk [vmem:[%s3] sm:$0x1] %vm50, %v64
  // Predicated region
  $region10: #{cross_entropy_criterion.1} parent=0 // pred_check
    _
  $region11: #{cross_entropy_criterion.1} parent=0 // pred_check_branch
    %67 = sbr.rel (0) target = $region13
  $region12: #{cross_entropy_criterion.1} parent=0 // pred_region
    _
  $region13: #{cross_entropy_criterion.1} parent=0 // pred_fallthru
    _
  // Predicated region
  $region14: #{cross_entropy_criterion.1} parent=0 // pred_check
    _
  $region15: #{cross_entropy_criterion.1} parent=0 // pred_check_branch
    %69 = sbr.rel (0) target = $region17
  $region16: #{cross_entropy_criterion.1} parent=0 // pred_region
    _
  $region17: #{cross_entropy_criterion.1} parent=0 // pred_fallthru
    _
  // Predicated region
  $region18: #{cross_entropy_criterion.1} parent=0 // pred_check
    _
  $region19: #{cross_entropy_criterion.1} parent=0 // pred_check_branch
    %71 = sbr.rel (0) target = $region21
  $region20: #{cross_entropy_criterion.1} parent=0 // pred_region
    _
  $region21: #{cross_entropy_criterion.1} parent=0 // pred_fallthru
    _
  // Predicated region
  $region22: #{cross_entropy_criterion.1} parent=0 // pred_check
    _
  $region23: #{cross_entropy_criterion.1} parent=0 // pred_check_branch
    %73 = sbr.rel (0) target = $region25
  $region24: #{cross_entropy_criterion.1} parent=0 // pred_region
    _
  $region25: #{cross_entropy_criterion.1} parent=0 // pred_fallthru
    _

</llo_original>
